<compile_context>
chip_gen: v6e
topology: v6e:2x2x1
jax: 0.10.0
libtpu: 0.0.40
codegen_flags: <defaults>
</compile_context>

<pallas_src>
import functools

import jax
import jax.numpy as jnp
from jax import lax
from jax.experimental import pallas as pl
from jax.experimental.pallas import tpu as pltpu


# ----------------------------------------------------------------------------
# Kernel: one (batch, spatial-tile) step of the online-softmax gather.
# ----------------------------------------------------------------------------
def _spatial_gather_kernel(probs_ref, feats_ref, out_ref,
                           m_sc, l_sc, acc_sc, *, scale):
    t = pl.program_id(1)

    @pl.when(t == 0)
    def _():
        m_sc[...] = jnp.full_like(m_sc, -jnp.inf)
        l_sc[...] = jnp.zeros_like(l_sc)
        acc_sc[...] = jnp.zeros_like(acc_sc)

    # (K, T) logits for this spatial tile; softmax math in f32.
    logits = probs_ref[...].astype(jnp.float32)
    if scale != 1.0:                      # static fold; no-op VPU work when scale==1
        logits = logits * scale

    m_prev = m_sc[...]                                              # (K, 1)
    m_new = jnp.maximum(m_prev, jnp.max(logits, axis=-1, keepdims=True))
    alpha = jnp.exp(m_prev - m_new)                                 # (K, 1)
    e = jnp.exp(logits - m_new)                                     # (K, T)

    l_sc[...] = alpha * l_sc[...] + jnp.sum(e, axis=-1, keepdims=True)

    # Weighted gather for this tile: contract (K, T) with (C, T) over T -> (K, C).
    # dot_general over the last dims of both operands: no k-transpose needed,
    # and the exp weights are cast to the (possibly bf16) feats dtype for the MXU.
    part = lax.dot_general(
        e.astype(feats_ref.dtype), feats_ref[...],
        dimension_numbers=(((1,), (1,)), ((), ())),
        preferred_element_type=jnp.float32)                         # (K, C)
    acc_sc[...] = alpha * acc_sc[...] + part
    m_sc[...] = m_new

    @pl.when(t == pl.num_programs(1) - 1)
    def _():
        # Normalize once on the small (K, C) accumulator; approx reciprocal -> EUP.
        inv_l = pl.reciprocal(l_sc[...], approx=True)               # (K, 1)
        out_ref[...] = (acc_sc[...] * inv_l).astype(out_ref.dtype)


# ----------------------------------------------------------------------------
# Wrapper: layout plumbing (reshape only, no transposes on the big tensors).
# ----------------------------------------------------------------------------
def spatial_gather_forward(feats_nchw, probs_nkhw, *, scale=1.0, tile_hw=None,
                           vmem_limit_bytes=48 * 1024 * 1024):
    B, C, H, W = feats_nchw.shape
    Bp, K, Hp, Wp = probs_nkhw.shape
    assert (B, H, W) == (Bp, Hp, Wp)
    HW = H * W

    # NCHW -> channel-major (B, C, HW) / (B, K, HW): pure reshapes, zero HBM cost.
    feats = feats_nchw.reshape(B, C, HW)
    probs = probs_nkhw.reshape(B, K, HW)

    # Spatial tile: largest multiple of 128 dividing HW (capped so a few tiles of
    # feats + probs stay well under the per-TC VMEM budget on v7x).
    if tile_hw is None:
        if HW % 128 == 0:
            tile_hw = 128
            cap = min(HW, 2048)
            t = 128
            while t <= cap:
                if HW % t == 0:
                    tile_hw = t
                t += 128
        else:
            tile_hw = HW          # single full-extent block (satisfies (8,128) rule)
    assert HW % tile_hw == 0
    num_t = HW // tile_hw

    kernel = functools.partial(_spatial_gather_kernel, scale=float(scale))

    cost = pl.CostEstimate(
        flops=int(2 * B * K * HW * C + 6 * B * K * HW),
        transcendentals=int(B * K * HW),
        bytes_accessed=int(probs.size * probs.dtype.itemsize
                           + feats.size * feats.dtype.itemsize
                           + B * K * C * 4),
    )

    out = pl.pallas_call(
        kernel,
        out_shape=jax.ShapeDtypeStruct((B, K, C), jnp.float32),
        grid=(B, num_t),
        in_specs=[
            pl.BlockSpec((None, K, tile_hw), lambda b, t: (b, 0, t)),   # probs
            pl.BlockSpec((None, C, tile_hw), lambda b, t: (b, 0, t)),   # feats
        ],
        out_specs=pl.BlockSpec((None, K, C), lambda b, t: (b, 0, 0)),
        scratch_shapes=[
            pltpu.VMEM((K, 1), jnp.float32),   # running max
            pltpu.VMEM((K, 1), jnp.float32),   # running denom
            pltpu.VMEM((K, C), jnp.float32),   # running weighted sum
        ],
        compiler_params=pltpu.CompilerParams(
            # HW is the softmax/contraction axis -> must stay "arbitrary".
            dimension_semantics=("parallel", "arbitrary"),
            vmem_limit_bytes=vmem_limit_bytes,
        ),
        cost_estimate=cost,
    )(probs, feats)

    # (B, K, C) -> (B, C, K, 1); the context tensor is tiny (K x C per image).
    return out.transpose(0, 2, 1)[..., None]


# ----------------------------------------------------------------------------
# Pure-JAX reference (same math as the PyTorch module).
# ----------------------------------------------------------------------------
def spatial_gather_reference(feats_nchw, probs_nkhw, scale=1.0):
    B, C, H, W = feats_nchw.shape
    K = probs_nkhw.shape[1]
    probs = probs_nkhw.reshape(B, K, H * W).astype(jnp.float32)
    feats = feats_nchw.reshape(B, C, H * W).astype(jnp.float32)
    p = jax.nn.softmax(scale * probs, axis=-1)                      # (B, K, HW)
    ctx = jnp.einsum("bkt,bct->bkc", p, feats,
                     preferred_element_type=jnp.float32)            # (B, K, C)
    return ctx.transpose(0, 2, 1)[..., None]                        # (B, C, K, 1)


if __name__ == "__main__":
    B, C, K = 2, 32, 8          # batch, feature channels, num object classes
    H = W = 16                  # HW = 256 -> two 128-wide spatial tiles

    root = jax.random.PRNGKey(0)
    k_feats, k_probs = jax.random.split(root)
    feats = jax.random.normal(k_feats, (B, C, H, W), jnp.float32)
    probs = jax.random.normal(k_probs, (B, K, H, W), jnp.float32)

    # bf16 MXU operand for the gather matmul (per the perf feedback); softmax
    # logits stay f32.
    feats_bf16 = feats.astype(jnp.bfloat16)

    out = spatial_gather_forward(feats_bf16, probs, scale=1.0, tile_hw=128)
    out = jax.block_until_ready(out)

    ref = spatial_gather_reference(feats_bf16, probs, scale=1.0)
    assert out.shape == (B, C, K, 1)
    assert jnp.allclose(out, ref, rtol=2e-2, atol=5e-3), "mismatch vs reference"

    print("KERNEL_OK")
</pallas_src>

<mosaic_0001>
module attributes {stable_mosaic.version = 11 : i64} {
  func.func @_spatial_gather_kernel(%arg0: i32, %arg1: i32, %arg2: memref<1x8x128xf32, #tpu.memory_space<vmem>>, %arg3: memref<1x32x128xbf16, #tpu.memory_space<vmem>>, %arg4: memref<1x8x32xf32, #tpu.memory_space<vmem>>, %arg5: memref<8x1xf32, #tpu.memory_space<vmem>>, %arg6: memref<8x1xf32, #tpu.memory_space<vmem>>, %arg7: memref<8x32xf32, #tpu.memory_space<vmem>>) attributes {dimension_semantics = [#tpu.dimension_semantics<parallel>, #tpu.dimension_semantics<arbitrary>], iteration_bounds = array<i64: 2, 2>, scalar_prefetch = 0 : i64, scratch_operands = 3 : i64, tpu.core_type = #tpu.core_type<tc>, window_params = [{transform_indices = @transform_0, window_bounds = array<i64: 1, 8, 128>}, {transform_indices = @transform_1, window_bounds = array<i64: 1, 32, 128>}, {transform_indices = @transform_2, window_bounds = array<i64: 1, 8, 32>}]} {
    %c0_i32 = arith.constant 0 : i32
    %0 = arith.cmpi eq, %arg1, %c0_i32 : i32
    %1 = arith.extui %0 : i1 to i32
    %c0_i32_0 = arith.constant 0 : i32
    %2 = arith.cmpi ne, %1, %c0_i32_0 : i32
    scf.if %2 {
      %cst_21 = arith.constant 0xFF800000 : f32
      %33 = vector.broadcast %cst_21 : f32 to vector<8x1xf32>
      %c0_22 = arith.constant 0 : index
      %c0_23 = arith.constant 0 : index
      %34 = vector.load %arg5[%c0_22, %c0_23] : memref<8x1xf32, #tpu.memory_space<vmem>>, vector<8x1xf32>
      tpu.vector_store %arg5[%c0_22, %c0_23], %33 {strides = array<i32>} : memref<8x1xf32, #tpu.memory_space<vmem>>, vector<8x1xf32>,
      %cst_24 = arith.constant 0.000000e+00 : f32
      %35 = vector.broadcast %cst_24 : f32 to vector<8x1xf32>
      %c0_25 = arith.constant 0 : index
      %c0_26 = arith.constant 0 : index
      %36 = vector.load %arg6[%c0_25, %c0_26] : memref<8x1xf32, #tpu.memory_space<vmem>>, vector<8x1xf32>
      tpu.vector_store %arg6[%c0_25, %c0_26], %35 {strides = array<i32>} : memref<8x1xf32, #tpu.memory_space<vmem>>, vector<8x1xf32>,
      %cst_27 = arith.constant 0.000000e+00 : f32
      %37 = vector.broadcast %cst_27 : f32 to vector<8x32xf32>
      %c0_28 = arith.constant 0 : index
      %c0_29 = arith.constant 0 : index
      %38 = vector.load %arg7[%c0_28, %c0_29] : memref<8x32xf32, #tpu.memory_space<vmem>>, vector<8x32xf32>
      tpu.vector_store %arg7[%c0_28, %c0_29], %37 {strides = array<i32>} : memref<8x32xf32, #tpu.memory_space<vmem>>, vector<8x32xf32>,
    } else {
    }
    %c0 = arith.constant 0 : index
    %c0_1 = arith.constant 0 : index
    %c0_2 = arith.constant 0 : index
    %3 = vector.load %arg2[%c0, %c0_1, %c0_2] : memref<1x8x128xf32, #tpu.memory_space<vmem>>, vector<1x8x128xf32>
    %4 = vector.shape_cast %3 : vector<1x8x128xf32> to vector<8x128xf32>
    %c0_3 = arith.constant 0 : index
    %c0_4 = arith.constant 0 : index
    %5 = vector.load %arg5[%c0_3, %c0_4] : memref<8x1xf32, #tpu.memory_space<vmem>>, vector<8x1xf32>
    %cst = arith.constant dense<0xFF800000> : vector<8xf32>
    %6 = vector.multi_reduction <maximumf>, %4, %cst [1] : vector<8x128xf32> to vector<8xf32>
    %7 = vector.shape_cast %6 : vector<8xf32> to vector<8x1xf32>
    %8 = arith.maximumf %5, %7 : vector<8x1xf32>
    %9 = arith.subf %5, %8 : vector<8x1xf32>
    %10 = math.exp %9 : vector<8x1xf32>
    %11 = vector.broadcast %8 : vector<8x1xf32> to vector<8x128xf32>
    %12 = arith.subf %4, %11 : vector<8x128xf32>
    %13 = math.exp %12 : vector<8x128xf32>
    %c0_5 = arith.constant 0 : index
    %c0_6 = arith.constant 0 : index
    %14 = vector.load %arg6[%c0_5, %c0_6] : memref<8x1xf32, #tpu.memory_space<vmem>>, vector<8x1xf32>
    %15 = arith.mulf %10, %14 : vector<8x1xf32>
    %cst_7 = arith.constant dense<0.000000e+00> : vector<8xf32>
    %16 = vector.multi_reduction <add>, %13, %cst_7 [1] : vector<8x128xf32> to vector<8xf32>
    %17 = vector.shape_cast %16 : vector<8xf32> to vector<8x1xf32>
    %18 = arith.addf %15, %17 : vector<8x1xf32>
    %c0_8 = arith.constant 0 : index
    %c0_9 = arith.constant 0 : index
    %19 = vector.load %arg6[%c0_8, %c0_9] : memref<8x1xf32, #tpu.memory_space<vmem>>, vector<8x1xf32>
    tpu.vector_store %arg6[%c0_8, %c0_9], %18 {strides = array<i32>} : memref<8x1xf32, #tpu.memory_space<vmem>>, vector<8x1xf32>,
    %20 = arith.truncf %13 : vector<8x128xf32> to vector<8x128xbf16>
    %c0_10 = arith.constant 0 : index
    %c0_11 = arith.constant 0 : index
    %c0_12 = arith.constant 0 : index
    %21 = vector.load %arg3[%c0_10, %c0_11, %c0_12] : memref<1x32x128xbf16, #tpu.memory_space<vmem>>, vector<1x32x128xbf16>
    %22 = vector.shape_cast %21 : vector<1x32x128xbf16> to vector<32x128xbf16>
    %cst_13 = arith.constant dense<0.000000e+00> : vector<8x32xf32>
    %23 = tpu.matmul %20, %22, %cst_13 {dimension_numbers = #tpu.dot_dimension_numbers<[1], [1], [0], [0], [0, 0, 1, 0], [], []>} : vector<8x128xbf16>, vector<32x128xbf16>, vector<8x32xf32> -> vector<8x32xf32>
    %c0_14 = arith.constant 0 : index
    %c0_15 = arith.constant 0 : index
    %24 = vector.load %arg7[%c0_14, %c0_15] : memref<8x32xf32, #tpu.memory_space<vmem>>, vector<8x32xf32>
    %25 = vector.broadcast %10 : vector<8x1xf32> to vector<8x32xf32>
    %26 = arith.mulf %25, %24 : vector<8x32xf32>
    %27 = arith.addf %26, %23 : vector<8x32xf32>
    %c0_16 = arith.constant 0 : index
    %c0_17 = arith.constant 0 : index
    %28 = vector.load %arg7[%c0_16, %c0_17] : memref<8x32xf32, #tpu.memory_space<vmem>>, vector<8x32xf32>
    tpu.vector_store %arg7[%c0_16, %c0_17], %27 {strides = array<i32>} : memref<8x32xf32, #tpu.memory_space<vmem>>, vector<8x32xf32>,
    %c0_18 = arith.constant 0 : index
    %c0_19 = arith.constant 0 : index
    %29 = vector.load %arg5[%c0_18, %c0_19] : memref<8x1xf32, #tpu.memory_space<vmem>>, vector<8x1xf32>
    tpu.vector_store %arg5[%c0_18, %c0_19], %8 {strides = array<i32>} : memref<8x1xf32, #tpu.memory_space<vmem>>, vector<8x1xf32>,
    %c1_i32 = arith.constant 1 : i32
    %30 = arith.cmpi eq, %arg1, %c1_i32 : i32
    %31 = arith.extui %30 : i1 to i32
    %c0_i32_20 = arith.constant 0 : i32
    %32 = arith.cmpi ne, %31, %c0_i32_20 : i32
    scf.if %32 {
      %c0_21 = arith.constant 0 : index
      %c0_22 = arith.constant 0 : index
      %33 = vector.load %arg6[%c0_21, %c0_22] : memref<8x1xf32, #tpu.memory_space<vmem>>, vector<8x1xf32>
      %34 = tpu.reciprocal %33 {approx = true} : vector<8x1xf32> -> vector<8x1xf32>
      %c0_23 = arith.constant 0 : index
      %c0_24 = arith.constant 0 : index
      %35 = vector.load %arg7[%c0_23, %c0_24] : memref<8x32xf32, #tpu.memory_space<vmem>>, vector<8x32xf32>
      %36 = vector.broadcast %34 : vector<8x1xf32> to vector<8x32xf32>
      %37 = arith.mulf %35, %36 : vector<8x32xf32>
      %c0_25 = arith.constant 0 : index
      %c0_26 = arith.constant 0 : index
      %c0_27 = arith.constant 0 : index
      %38 = vector.load %arg4[%c0_25, %c0_26, %c0_27] : memref<1x8x32xf32, #tpu.memory_space<vmem>>, vector<1x8x32xf32>
      %39 = vector.shape_cast %38 : vector<1x8x32xf32> to vector<8x32xf32>
      %40 = vector.shape_cast %37 : vector<8x32xf32> to vector<1x8x32xf32>
      tpu.vector_store %arg4[%c0_25, %c0_26, %c0_27], %40 {strides = array<i32>} : memref<1x8x32xf32, #tpu.memory_space<vmem>>, vector<1x8x32xf32>,
    } else {
    }
    return
  }
  func.func @transform_0(%arg0: i32, %arg1: i32) -> (i32, i32, i32) {
    %c0_i32 = arith.constant 0 : i32
    %c0_i32_0 = arith.constant 0 : i32
    return %arg0, %c0_i32, %arg1 : i32, i32, i32
  }
  func.func @transform_1(%arg0: i32, %arg1: i32) -> (i32, i32, i32) {
    %c0_i32 = arith.constant 0 : i32
    %c0_i32_0 = arith.constant 0 : i32
    return %arg0, %c0_i32, %arg1 : i32, i32, i32
  }
  func.func @transform_2(%arg0: i32, %arg1: i32) -> (i32, i32, i32) {
    %c0_i32 = arith.constant 0 : i32
    %c0_i32_0 = arith.constant 0 : i32
    %c0_i32_1 = arith.constant 0 : i32
    return %arg0, %c0_i32, %c0_i32_0 : i32, i32, i32
  }
}

</mosaic_0001>

<llo_original>
// kernel: tpu_custom_call.1
$region0: #{tpu_custom_call.1}
  #allocation0 [shape = 'u32[]', space=smem, size = 0x4, offset = 0x4, fixed_abs, tag = 'smem constant byte address 0x4 - core index']
  #allocation1 [shape = 'u32[144,128]{1,0:T(1,128)}', space=vmem, size = 0x12000, scoped, tag = 'internal scratch']
  #allocation2 [shape = 'f32[8,1]{1,0:T(8,128)}', space=vmem, size = 0x1000, scoped, tag = 'scratch operand']
  #allocation3 [shape = 'f32[8,1]{1,0:T(8,128)}', space=vmem, size = 0x1000, scoped, tag = 'scratch operand']
  #allocation4 [shape = 'f32[8,32]{1,0:T(8,128)}', space=vmem, size = 0x1000, scoped, tag = 'scratch operand']
  %s0 = inlined_call_operand.hbm [shape: f32[2,8,256], index: 0, kind: input, shape index: {}]
  %s1 = inlined_call_operand.hbm [shape: bf16[2,32,256], index: 1, kind: input, shape index: {}]
  %s2 = inlined_call_operand.hbm [shape: f32[2,8,32], index: 2, kind: output, shape index: {}]
  %s3 = sld [smem:[#allocation0]]
  $region57: #{tpu_custom_call.1} parent=0
    _
  %s5 = ssub.s32 1, %s3
  %s6 = scalar_select 0, %s5, %s3
  $region1: #{tpu_custom_call.1} parent=0
    #allocation5 [shape = 'u8[8192]{0}', space=vmem, size = 0x2000, scoped, tag = 'input window, operand 0']
    #allocation6 [shape = 's32[2]{0}', space=sflag, size = 0x8, scoped, tag = 'scoped memory for tpu_custom_call.1']
    #allocation7 [shape = 's32[2]{0}', space=sflag, size = 0x8, scoped, tag = 'scoped memory for tpu_custom_call.1']
    #allocation8 [shape = 'u8[16384]{0}', space=vmem, size = 0x4000, scoped, tag = 'input window, operand 1']
    #allocation9 [shape = 's32[2]{0}', space=sflag, size = 0x8, scoped, tag = 'scoped memory for tpu_custom_call.1']
    #allocation10 [shape = 'u8[8192]{0}', space=vmem, size = 0x2000, scoped, tag = 'output window, operand 0']
    %7 = vsyncpa [#allocation6], 0
    %s8 = scalar_lea.sflag [#allocation6], 1
    %9 = vsyncpa %s8, 0
    %10 = vsyncpa [#allocation9], 0
    %s11 = scalar_lea.sflag [#allocation9], 1
    %12 = vsyncpa %s11, 0
    %13 = vsyncpa [#allocation7], 0
    %s14 = scalar_lea.sflag [#allocation7], 1
    %15 = vsyncpa %s14, 0
    loop: start=0, step=1, limit=6
    $region2: #{tpu_custom_call.1} parent=1 // loop_pre_header
      _
    $region3: #{tpu_custom_call.1} parent=1 // loop_header
      %s17 = sphi 0, %s21
      %p18 = scmp.ge.s32.totalorder %s17, 6
      %s24 = sphi 0, %s36
      %s25 = sphi 0, %s32
      %s26 = sphi 0, %s24
      %s27 = sphi 0, %s25
      %s28 = sphi 0, %s26
      %s29 = sphi 0, %s27
      %s41 = sphi 0, %s43
      %s44 = sphi 0, %s41
      %s45 = sphi 0, %s44
      %s61 = sphi 0, %s45
      %s69 = sphi 0, %s71
      %s72 = sphi 0, %s69
      %s73 = sphi 0, %s72
      %s89 = sphi 0, %s73
      %s95 = sphi 0, %s97
      %s98 = sphi 0, %s95
      %s99 = sphi 0, %s98
      %s115 = sphi 0, %s99
    $region4: #{tpu_custom_call.1} parent=1 // loop_header_branch
      %20 = sbr.rel (%p18) target = $region8
    $region5: #{tpu_custom_call.1} parent=1 // loop_body
      %s22 = ssub.s32 %s17, 1
      %s23 = ssub.s32 %s17, 2
      %s30 = sadd.s32 1, %s25
      %p31 = scmp.ge.s32.totalorder %s30, 2
      %s32 = scalar_select %p31, 0, %s30
      %s33 = sadd.s32 1, %s24
      %s34 = scalar_select %p31, %s33, %s24
      %p35 = scmp.ge.s32.totalorder %s34, 2
      %s36 = scalar_select %p35, 0, %s34
      %s37 = ssub.s32 %s24, %s36
      %s38 = ssub.s32 %s25, %s32
      %s39 = sor.u32 %s37, %s38
      %p40 = scmp.eq.s32.totalorder %s39, 0
      %s42 = sadd.s32 %s41, 1
      %s43 = scalar_select %p40, %s41, %s42
      %p46 = pneg %p40
      %p47 = scmp.eq.s32.totalorder %s17, 3
      %p48 = por %p46, %p47
      %p49 = scmp.ne.s32.totalorder %s41, %s44
      %p50 = scmp.eq.s32.totalorder %s17, 0
      %p51 = por %p49, %p50
      %p52 = scmp.ne.s32.totalorder %s41, %s44
      %p53 = scmp.eq.s32.totalorder %s22, 3
      %p54 = por %p52, %p53
      %p55 = scmp.ne.s32.totalorder %s44, %s45
      %p56 = scmp.eq.s32.totalorder %s22, 0
      %p57 = por %p55, %p56
      %p58 = scmp.ne.s32.totalorder %s44, %s45
      %p59 = scmp.eq.s32.totalorder %s23, 3
      %p60 = por %p58, %p59
      %p62 = scmp.ne.s32.totalorder %s45, %s61
      %p63 = scmp.eq.s32.totalorder %s23, 0
      %p64 = por %p62, %p63
      %s65 = ssub.s32 %s24, %s36
      %s66 = ssub.s32 %s25, %s32
      %s67 = sor.u32 %s65, %s66
      %p68 = scmp.eq.s32.totalorder %s67, 0
      %s70 = sadd.s32 %s69, 1
      %s71 = scalar_select %p68, %s69, %s70
      %p74 = pneg %p68
      %p75 = scmp.eq.s32.totalorder %s17, 3
      %p76 = por %p74, %p75
      %p77 = scmp.ne.s32.totalorder %s69, %s72
      %p78 = scmp.eq.s32.totalorder %s17, 0
      %p79 = por %p77, %p78
      %p80 = scmp.ne.s32.totalorder %s69, %s72
      %p81 = scmp.eq.s32.totalorder %s22, 3
      %p82 = por %p80, %p81
      %p83 = scmp.ne.s32.totalorder %s72, %s73
      %p84 = scmp.eq.s32.totalorder %s22, 0
      %p85 = por %p83, %p84
      %p86 = scmp.ne.s32.totalorder %s72, %s73
      %p87 = scmp.eq.s32.totalorder %s23, 3
      %p88 = por %p86, %p87
      %p90 = scmp.ne.s32.totalorder %s73, %s89
      %p91 = scmp.eq.s32.totalorder %s23, 0
      %p92 = por %p90, %p91
      %s93 = ssub.s32 %s24, %s36
      %p94 = scmp.eq.s32.totalorder %s93, 0
      %s96 = sadd.s32 %s95, 1
      %s97 = scalar_select %p94, %s95, %s96
      %p100 = pneg %p94
      %p101 = scmp.eq.s32.totalorder %s17, 3
      %p102 = por %p100, %p101
      %p103 = scmp.ne.s32.totalorder %s95, %s98
      %p104 = scmp.eq.s32.totalorder %s17, 0
      %p105 = por %p103, %p104
      %p106 = scmp.ne.s32.totalorder %s95, %s98
      %p107 = scmp.eq.s32.totalorder %s22, 3
      %p108 = por %p106, %p107
      %p109 = scmp.ne.s32.totalorder %s98, %s99
      %p110 = scmp.eq.s32.totalorder %s22, 0
      %p111 = por %p109, %p110
      %p112 = scmp.ne.s32.totalorder %s98, %s99
      %p113 = scmp.eq.s32.totalorder %s23, 3
      %p114 = por %p112, %p113
      %p116 = scmp.ne.s32.totalorder %s99, %s115
      %p117 = scmp.eq.s32.totalorder %s23, 0
      %p118 = por %p116, %p117
      %p119 = scmp.le.s32.totalorder 1, %s17
      %p120 = scmp.lt.s32.totalorder %s17, 5
      %p121 = pnand %p119, %p120
      %p122 = pneg %p121
      // Predicated region
      $region9: #{tpu_custom_call.1} parent=5 // pred_check
        _
      $region10: #{tpu_custom_call.1} parent=5 // pred_check_branch
        %124 = sbr.rel (%p121) target = $region12
      $region11: #{tpu_custom_call.1} parent=5 // pred_region
        %s125 = ssub.s32 %s17, 1
      $region12: #{tpu_custom_call.1} parent=5 // pred_fallthru
        _
      %p126 = scmp.lt.s32.totalorder %s17, 4
      // Predicated region
      $region13: #{tpu_custom_call.1} parent=5 // pred_check
        %p127 = pneg %p126
      $region14: #{tpu_custom_call.1} parent=5 // pred_check_branch
        %129 = sbr.rel (%p127) target = $region16
      $region15: #{tpu_custom_call.1} parent=5 // pred_region
        // Predicated region
        $region17: #{tpu_custom_call.1} parent=15 // pred_check
          %p130 = pneg %p51
        $region18: #{tpu_custom_call.1} parent=15 // pred_check_branch
          %132 = sbr.rel (%p130) target = $region20
        $region19: #{tpu_custom_call.1} parent=15 // pred_region
          %s133 = sand.u32 %s41, 1
          %s134 = scalar_lea.sflag [#allocation6], %s133
          %s135 = sand.u32 %s41, 1
          %s136 = smul.addr %s135, 8
          %s137 = scalar_lea.vmem [#allocation5], %s136
          %s139 = ssub.s32 128, 128
          %140 = vsyncadd %s134, %s139
          %s141 = smul.addr %s24, 2
          %s142 = sadd.s32 %s25, %s141
          %s143 = smul.addr %s142, 128
          %s144 = scalar_lea.hbm %s0, %s143
          %s146 = sshll.u32 %s137, 4
          %s147 = int_to_ptr.vmem [resolvable:$true] %s146
          %149 = dma.hbm_to_vmem [thread:$0]  %s144, 128, %s147, %s134
        $region20: #{tpu_custom_call.1} parent=15 // pred_fallthru
          _
        // Predicated region
        $region21: #{tpu_custom_call.1} parent=15 // pred_check
          %p150 = pneg %p79
        $region22: #{tpu_custom_call.1} parent=15 // pred_check_branch
          %152 = sbr.rel (%p150) target = $region24
        $region23: #{tpu_custom_call.1} parent=15 // pred_region
          %s153 = sand.u32 %s69, 1
          %s154 = scalar_lea.sflag [#allocation9], %s153
          %s155 = sand.u32 %s69, 1
          %s156 = smul.addr %s155, 16
          %s157 = scalar_lea.vmem [#allocation8], %s156
          %s159 = ssub.s32 256, 256
          %160 = vsyncadd %s154, %s159
          %s161 = smul.addr %s24, 8
          %s162 = sadd.s32 %s25, %s161
          %s163 = smul.addr %s162, 64
          %s164 = scalar_lea.hbm %s1, %s163
          %s165 = sshll.u32 %s157, 4
          %s166 = int_to_ptr.vmem [resolvable:$true] %s165
          %171 = dma.hbm_to_vmem [thread:$0]  %s164, 256, %s166, %s154, 128, 64, 4
        $region24: #{tpu_custom_call.1} parent=15 // pred_fallthru
          _
      $region16: #{tpu_custom_call.1} parent=5 // pred_fallthru
        _
      %p172 = scmp.le.s32.totalorder 1, %s17
      %p173 = scmp.lt.s32.totalorder %s17, 5
      %p174 = pnand %p172, %p173
      %p175 = pneg %p174
      // Predicated region
      $region25: #{tpu_custom_call.1} parent=5 // pred_check
        _
      $region26: #{tpu_custom_call.1} parent=5 // pred_check_branch
        %177 = sbr.rel (%p174) target = $region28
      $region27: #{tpu_custom_call.1} parent=5 // pred_region
        %s178 = ssub.s32 %s17, 1
        %s179 = sand.u32 %s44, 1
        %s180 = scalar_lea.sflag [#allocation6], %s179
        %s181 = sand.u32 %s44, 1
        %s182 = smul.addr %s181, 8
        %s183 = scalar_lea.vmem [#allocation5], %s182
        // Predicated region
        $region29: #{tpu_custom_call.1} parent=27 // pred_check
          %p184 = pneg %p57
        $region30: #{tpu_custom_call.1} parent=27 // pred_check_branch
          %186 = sbr.rel (%p184) target = $region32
        $region31: #{tpu_custom_call.1} parent=27 // pred_region
          %187 = dma.done %s180, 128
        $region32: #{tpu_custom_call.1} parent=27 // pred_fallthru
          _
        %s188 = sand.u32 %s72, 1
        %s189 = scalar_lea.sflag [#allocation9], %s188
        %s190 = sand.u32 %s72, 1
        %s191 = smul.addr %s190, 16
        %s192 = scalar_lea.vmem [#allocation8], %s191
        // Predicated region
        $region33: #{tpu_custom_call.1} parent=27 // pred_check
          %p193 = pneg %p85
        $region34: #{tpu_custom_call.1} parent=27 // pred_check_branch
          %195 = sbr.rel (%p193) target = $region36
        $region35: #{tpu_custom_call.1} parent=27 // pred_region
          %196 = dma.done %s189, 256
        $region36: #{tpu_custom_call.1} parent=27 // pred_fallthru
          _
        %s197 = sand.u32 %s44, 1
        %s198 = scalar_lea.sflag [#allocation6], %s197
        %s199 = sand.u32 %s44, 1
        %s200 = smul.addr %s199, 8
        %s201 = scalar_lea.vmem [#allocation5], %s200
        %p202 = pneg %p57
        %p203 = pneg %p54
        %s204 = sand.u32 %s72, 1
        %s205 = scalar_lea.sflag [#allocation9], %s204
        %s206 = sand.u32 %s72, 1
        %s207 = smul.addr %s206, 16
        %s208 = scalar_lea.vmem [#allocation8], %s207
        %p209 = pneg %p85
        %p210 = pneg %p82
        %p211 = pneg %p111
        %p212 = pneg %p108
        %s213 = sand.u32 %s98, 1
        %s214 = scalar_lea.sflag [#allocation7], %s213
        %s215 = sand.u32 %s98, 1
        %s216 = smul.addr %s215, 8
        %s217 = scalar_lea.vmem [#allocation10], %s216
        %p219 = scmp.eq.s32.totalorder %s27, 0
        // Predicated region
        $region37: #{tpu_custom_call.1} parent=27 // pred_check
          %p220 = pneg %p219
        $region38: #{tpu_custom_call.1} parent=27 // pred_check_branch
          %222 = sbr.rel (%p220) target = $region40
        $region39: #{tpu_custom_call.1} parent=27 // pred_region
          %vm223 = vcmask 7168
          %224 = vst.msk [vmem:[#allocation2] sm:$0xff] %vm223, -inf
          %225 = vst.msk [vmem:[#allocation3] sm:$0xff] %vm223, 0.0
          %vm226 = vcmask 261120
          %227 = vst.msk [vmem:[#allocation4] sm:$0xff] %vm226, 0.0
        $region40: #{tpu_custom_call.1} parent=27 // pred_fallthru
          _
        %v228 = vld [vmem:[%s183] sm:$0xff]
        %v229 = vld [vmem:[#allocation2] sm:$0xff]
        %230 = vmax.xlane.f32.xlu0 %v228
        %v231 = vpop.xlane.xlu0 %230
        %v232 = vmax.f32 %v229, %v231
        %v233 = vsub.f32 %v229, %v232
        %v234 = vmul.f32 %v233, 1.442695
        %v235 = vpow.pop %v234
        %237 = vset.pattern.permute.xlu0 0
        %238 = vperm.xlu0 %237, %v232
        %v239 = vpop.permute.xlu0 %238
        %v241 = vsub.f32 %v228, %v239
        %v242 = vmul.f32 %v241, 1.442695
        %v243 = vpow.pop %v242
        %v244 = vld [vmem:[#allocation3] sm:$0xff]
        %v245 = vmul.f32 %v235, %v244
        %246 = vadd.xlane.f32.xlu0 %v243
        %v247 = vpop.xlane.xlu0 %246
        %v248 = vadd.f32 %v245, %v247
        %vm249 = vcmask 7168
        %250 = vst.msk [vmem:[#allocation3] sm:$0xff] %vm249, %v248
        %v251 = vpack.c.bf16 %v243, %v243
        %v252 = vld [vmem:[%s192] sm:$0xf]
        %v253 = vld [vmem:[%s192 + $0x4] sm:$0xf]
        %v254 = vld [vmem:[%s192 + $0x8] sm:$0xf]
        %v255 = vld [vmem:[%s192 + $0xc] sm:$0xf]
        %v260 = vunpack.c.l.b16 %v252
        %v261 = vunpack.c.l.b16 %v253
        %v262 = vunpack.c.l.b16 %v254
        %v263 = vunpack.c.l.b16 %v255
        %v264 = vpack.c.b16 %v261, %v260
        %v265 = vpack.c.b16 %v263, %v262
        %268 = vmatprep.subr.bf16.mxu0 0
        %269 = vmatpush1.bf16.xpose.msra.mxu0 0
        %270 = vmatprep.subr.bf16.mxu0 0
        %271 = vmatpush1.bf16.xpose.msra.mxu0 0
        %272 = vmatprep.subr.bf16.mxu0 0
        %273 = vmatpush1.bf16.xpose.msra.mxu0 0
        %274 = vmatprep.subr.bf16.mxu0 0
        %275 = vmatpush1.bf16.xpose.msra.mxu0 0
        %276 = vmatprep.subr.bf16.mxu0 0
        %277 = vmatpush1.bf16.xpose.msra.mxu0 0
        %278 = vmatprep.subr.bf16.mxu0 0
        %279 = vmatpush1.bf16.xpose.msra.mxu0 0
        %280 = vmatprep.subr.bf16.mxu0 0
        %281 = vmatpush1.bf16.xpose.msra.mxu0 %v265
        %282 = vmatprep.subr.bf16.mxu0 0
        %283 = vmatpush1.bf16.xpose.msra.mxu0 %v264
        %284 = vmatprep.subr.bf16.mxu0 0
        %285 = vmatpush2.bf16.xpose.msra.mxu0 0
        %286 = vmatprep.subr.bf16.mxu0 0
        %287 = vmatpush2.bf16.xpose.msra.mxu0 0
        %288 = vmatprep.subr.bf16.mxu0 0
        %289 = vmatpush2.bf16.xpose.msra.mxu0 0
        %290 = vmatprep.subr.bf16.mxu0 0
        %291 = vmatpush2.bf16.xpose.msra.mxu0 0
        %292 = vmatprep.subr.bf16.mxu0 0
        %293 = vmatpush2.bf16.xpose.msra.mxu0 0
        %294 = vmatprep.subr.bf16.mxu0 0
        %295 = vmatpush2.bf16.xpose.msra.mxu0 0
        %296 = vmatprep.subr.bf16.mxu0 0
        %297 = vmatpush2.bf16.xpose.msra.mxu0 0
        %298 = vmatprep.subr.bf16.mxu0 0
        %299 = vmatpush2.bf16.xpose.msra.mxu0 0
        %300 = vmatprep.mubr.bf16.mxu0 0
        %301 = vmatmul.mubr.bf16.gmra.mxu0 %v251
        %v302 = vpop.f32.mrf.mxu0
        %v303 = vadd.f32 0.0, %v302
        %v304 = vpop.f32.mrf.mxu0
        %v305 = vpop.f32.mrf.mxu0
        %v306 = vpop.f32.mrf.mxu0
        %307 = vdwg.mxu0
        %v308 = vld [vmem:[#allocation4] sm:$0xff]
        %310 = vset.pattern.permute.xlu0 0
        %311 = vperm.xlu0 %310, %v235
        %v312 = vpop.permute.xlu0 %311
        %v314 = vmul.f32 %v312, %v308
        %v315 = vadd.f32 %v314, %v303
        %vm316 = vcmask 261120
        %317 = vst.msk [vmem:[#allocation4] sm:$0xff] %vm316, %v315
        %318 = vst.msk [vmem:[#allocation2] sm:$0xff] %vm249, %v232
        %p319 = scmp.eq.s32.totalorder %s27, 1
        // Predicated region
        $region41: #{tpu_custom_call.1} parent=27 // pred_check
          %p320 = pneg %p319
        $region42: #{tpu_custom_call.1} parent=27 // pred_check_branch
          %322 = sbr.rel (%p320) target = $region44
        $region43: #{tpu_custom_call.1} parent=27 // pred_region
          %v323 = vld [vmem:[#allocation3] sm:$0xff]
          %v324 = vrcp.pop %v323
          %v325 = vld [vmem:[#allocation4] sm:$0xff]
          %327 = vset.pattern.permute.xlu0 0
          %328 = vperm.xlu0 %327, %v324
          %v329 = vpop.permute.xlu0 %328
          %v331 = vmul.f32 %v325, %v329
          %332 = vst.msk [vmem:[%s217] sm:$0xff] %vm316, %v331
        $region44: #{tpu_custom_call.1} parent=27 // pred_fallthru
          _
        %s333 = sand.u32 %s98, 1
        %s334 = scalar_lea.sflag [#allocation7], %s333
        %s335 = sand.u32 %s98, 1
        %s336 = smul.addr %s335, 8
        %s337 = scalar_lea.vmem [#allocation10], %s336
        // Predicated region
        $region45: #{tpu_custom_call.1} parent=27 // pred_check
          %p338 = pneg %p108
        $region46: #{tpu_custom_call.1} parent=27 // pred_check_branch
          %340 = sbr.rel (%p338) target = $region48
        $region47: #{tpu_custom_call.1} parent=27 // pred_region
          %s342 = ssub.s32 128, 128
          %343 = vsyncadd %s334, %s342
          %s344 = smul.addr %s26, 128
          %s345 = scalar_lea.hbm %s2, %s344
          %s347 = sshll.u32 %s337, 4
          %s348 = int_to_ptr.vmem [resolvable:$true] %s347
          %350 = dma.vmem_to_hbm [thread:$0]  %s348, 128, %s345, %s334
        $region48: #{tpu_custom_call.1} parent=27 // pred_fallthru
          _
      $region28: #{tpu_custom_call.1} parent=5 // pred_fallthru
        _
      %p351 = scmp.le.s32.totalorder 2, %s17
      // Predicated region
      $region49: #{tpu_custom_call.1} parent=5 // pred_check
        %p352 = pneg %p351
      $region50: #{tpu_custom_call.1} parent=5 // pred_check_branch
        %354 = sbr.rel (%p352) target = $region52
      $region51: #{tpu_custom_call.1} parent=5 // pred_region
        %s355 = ssub.s32 %s17, 2
        // Predicated region
        $region53: #{tpu_custom_call.1} parent=51 // pred_check
          %p356 = pneg %p114
        $region54: #{tpu_custom_call.1} parent=51 // pred_check_branch
          %358 = sbr.rel (%p356) target = $region56
        $region55: #{tpu_custom_call.1} parent=51 // pred_region
          %s359 = sand.u32 %s99, 1
          %s360 = scalar_lea.sflag [#allocation7], %s359
          %s361 = sand.u32 %s99, 1
          %s362 = smul.addr %s361, 8
          %s363 = scalar_lea.vmem [#allocation10], %s362
          %364 = dma.done %s360, 128
        $region56: #{tpu_custom_call.1} parent=51 // pred_fallthru
          _
      $region52: #{tpu_custom_call.1} parent=5 // pred_fallthru
        _
    $region6: #{tpu_custom_call.1} parent=1 // loop_footer
      %s21 = sadd.s32 1, %s17
    $region7: #{tpu_custom_call.1} parent=1 // loop_footer_branch
      %16 = sbr.rel target = $region3
    $region8: #{tpu_custom_call.1} parent=1 // loop_exit
      _
    %365 = vsyncpa [#allocation6], 1
    %s366 = scalar_lea.sflag [#allocation6], 1
    %367 = vsyncpa %s366, 1
    %368 = vsyncpa [#allocation9], 1
    %s369 = scalar_lea.sflag [#allocation9], 1
    %370 = vsyncpa %s369, 1
    %371 = vsyncpa [#allocation7], 1
    %s372 = scalar_lea.sflag [#allocation7], 1
    %373 = vsyncpa %s372, 1

</llo_original>
